<compile_context>
chip_gen: v5e
topology: v5e:2x2
jax: 0.10.0
libtpu: 0.0.40
codegen_flags: <defaults>
</compile_context>

<pallas_src>
import jax
import jax.numpy as jnp
from jax.experimental import pallas as pl
from jax.experimental.pallas import tpu as pltpu


def _classifier_kernel(hs_ref, w1_ref, b1_ref, w2_ref, b2_ref, out_ref):
    """mish(cls @ W1 + b1) @ W2 + b2, entirely in VMEM.

    hs_ref : (TB, SB, H) f32   — only row 0 of the SB seq slab is used (CLS)
    w1_ref : (H, H)      bf16
    b1_ref : (1, H)      f32
    w2_ref : (H, C_pad)  bf16  — zero-padded to a lane-dense 128 columns
    b2_ref : (1, C_pad)  f32
    out_ref: (TB, C_pad) f32
    """
    # CLS token rows, cast once to bf16 so the MXU gets native bf16 operands
    # (no f32 upcast of the big weight tiles on the VPU).
    x = hs_ref[:, 0, :].astype(jnp.bfloat16)                      # (TB, H)

    # Linear 1: (TB, H) @ (H, H) + (1, H), f32 accumulation on the MXU.
    h = jnp.dot(x, w1_ref[...], preferred_element_type=jnp.float32)
    h = h + b1_ref[...]

    # Mish: x * tanh(softplus(x)) with a guarded softplus (no inf intermediate).
    sp = jnp.where(h > 20.0, h, jnp.log1p(jnp.exp(jnp.minimum(h, 20.0))))
    h = h * jnp.tanh(sp)

    # Linear 2: (TB, H) @ (H, C_pad) + (1, C_pad), lane-dense output store.
    out = jnp.dot(h.astype(jnp.bfloat16), w2_ref[...],
                  preferred_element_type=jnp.float32)
    out_ref[...] = (out + b2_ref[...]).astype(out_ref.dtype)


def emo_classifier_forward(hidden_states, w1, b1, w2, b2):
    """hidden_states: (B, S, H) f32 — output of base_model.
    w1: (H, H), b1: (H,), w2: (H, C), b2: (C,). Returns logits (B, C) f32."""
    B, S, H = hidden_states.shape
    C = w2.shape[1]

    # Lane-dense padded output width (multiple of 128).
    C_pad = max(128, ((C + 127) // 128) * 128)

    # bf16 weights (halves the dominant weight DMA); biases stay f32.
    # In production these would be pre-padded / pre-cast once, not per call.
    w1_bf = w1.astype(jnp.bfloat16)
    w2_pad = jnp.zeros((H, C_pad), jnp.bfloat16).at[:, :C].set(
        w2.astype(jnp.bfloat16))
    b1_2d = b1.reshape(1, H).astype(jnp.float32)
    b2_pad = jnp.zeros((1, C_pad), jnp.float32).at[0, :C].set(
        b2.astype(jnp.float32))

    # Only a small slab of seq positions is DMA'd per batch tile; SB = min(S, 8)
    # keeps the sublane dim either full or a multiple of 8, and row 0 (CLS) is
    # picked inside the kernel. Weights are resident across the batch grid.
    SB = min(S, 8)
    TB = B if B <= 128 else 128
    grid = (pl.cdiv(B, TB),)

    flops = 2 * B * H * H + 2 * B * H * C_pad
    transcendentals = 3 * B * H  # exp + log1p + tanh per hidden element
    bytes_accessed = (
        H * H * 2 + H * C_pad * 2            # bf16 weights
        + (H + C_pad) * 4                    # f32 biases
        + B * SB * H * 4                     # CLS slab read
        + B * C_pad * 4                      # output write
    )

    out = pl.pallas_call(
        _classifier_kernel,
        out_shape=jax.ShapeDtypeStruct((B, C_pad), jnp.float32),
        grid_spec=pltpu.PrefetchScalarGridSpec(
            num_scalar_prefetch=0,
            grid=grid,
            in_specs=[
                pl.BlockSpec((TB, SB, H), lambda i: (i, 0, 0)),   # CLS slab
                pl.BlockSpec((H, H), lambda i: (0, 0)),           # W1 resident
                pl.BlockSpec((1, H), lambda i: (0, 0)),           # b1
                pl.BlockSpec((H, C_pad), lambda i: (0, 0)),       # W2 resident
                pl.BlockSpec((1, C_pad), lambda i: (0, 0)),       # b2
            ],
            out_specs=pl.BlockSpec((TB, C_pad), lambda i: (i, 0)),
        ),
        compiler_params=pltpu.CompilerParams(
            dimension_semantics=("parallel",),
        ),
        cost_estimate=pl.CostEstimate(
            flops=flops,
            transcendentals=transcendentals,
            bytes_accessed=bytes_accessed,
        ),
    )(hidden_states, w1_bf, b1_2d, w2_pad, b2_pad)

    return out[:, :C]


if __name__ == "__main__":
    # Small shapes consistent with the module's forward:
    #   batch=2, seq=8, hidden=256 (stand-in for base_model_output_size=768),
    #   n_classes=8.
    B, S, H, C = 2, 8, 256, 8

    key = jax.random.PRNGKey(0)
    k_hs, k_w1, k_w2 = jax.random.split(key, 3)

    # Synthetic base_model output hidden_states (B, S, H).
    hidden_states = jax.random.normal(k_hs, (B, S, H), dtype=jnp.float32)

    # Deterministic parameter init matching the PyTorch module:
    # weight ~ N(0, 0.02), bias = 0.  Stored as (in, out) for x @ W.
    w1 = 0.02 * jax.random.normal(k_w1, (H, H), dtype=jnp.float32)
    b1 = jnp.zeros((H,), dtype=jnp.float32)
    w2 = 0.02 * jax.random.normal(k_w2, (H, C), dtype=jnp.float32)
    b2 = jnp.zeros((C,), dtype=jnp.float32)

    logits = emo_classifier_forward(hidden_states, w1, b1, w2, b2)
    logits = jax.block_until_ready(logits)

    # Pure-JAX reference using the same bf16-quantized weights/activations the
    # kernel feeds to the MXU (f32 accumulation), so tolerances stay tight.
    w1_q = w1.astype(jnp.bfloat16).astype(jnp.float32)
    w2_q = w2.astype(jnp.bfloat16).astype(jnp.float32)
    cls = hidden_states[:, 0, :]
    x_q = cls.astype(jnp.bfloat16).astype(jnp.float32)
    h_ref = jnp.dot(x_q, w1_q, precision=jax.lax.Precision.HIGHEST) + b1
    h_ref = h_ref * jnp.tanh(jnp.log1p(jnp.exp(h_ref)))
    h_q = h_ref.astype(jnp.bfloat16).astype(jnp.float32)
    ref = jnp.dot(h_q, w2_q, precision=jax.lax.Precision.HIGHEST) + b2

    assert logits.shape == (B, C)
    assert jnp.allclose(logits, ref, atol=2e-3, rtol=2e-2), (
        float(jnp.max(jnp.abs(logits - ref))))

    print("KERNEL_OK")
</pallas_src>

<mosaic_0001>
module attributes {stable_mosaic.version = 11 : i64} {
  func.func @_classifier_kernel(%arg0: i32, %arg1: memref<2x8x256xf32, #tpu.memory_space<vmem>>, %arg2: memref<256x256xbf16, #tpu.memory_space<vmem>>, %arg3: memref<1x256xf32, #tpu.memory_space<vmem>>, %arg4: memref<256x128xbf16, #tpu.memory_space<vmem>>, %arg5: memref<1x128xf32, #tpu.memory_space<vmem>>, %arg6: memref<2x128xf32, #tpu.memory_space<vmem>>) attributes {dimension_semantics = [#tpu.dimension_semantics<parallel>], iteration_bounds = array<i64: 1>, scalar_prefetch = 0 : i64, scratch_operands = 0 : i64, tpu.core_type = #tpu.core_type<tc>, window_params = [{transform_indices = @transform_0, window_bounds = array<i64: 2, 8, 256>}, {pipeline_mode = #tpu.pipeline_mode<synchronous>, transform_indices = @transform_1, window_bounds = array<i64: 256, 256>}, {pipeline_mode = #tpu.pipeline_mode<synchronous>, transform_indices = @transform_2, window_bounds = array<i64: 1, 256>}, {pipeline_mode = #tpu.pipeline_mode<synchronous>, transform_indices = @transform_3, window_bounds = array<i64: 256, 128>}, {pipeline_mode = #tpu.pipeline_mode<synchronous>, transform_indices = @transform_4, window_bounds = array<i64: 1, 128>}, {transform_indices = @transform_5, window_bounds = array<i64: 2, 128>}]} {
    %c0 = arith.constant 0 : index
    %c0_0 = arith.constant 0 : index
    %c0_1 = arith.constant 0 : index
    %0 = vector.load %arg1[%c0, %c0_0, %c0_1] : memref<2x8x256xf32, #tpu.memory_space<vmem>>, vector<2x1x256xf32>
    %1 = vector.shape_cast %0 : vector<2x1x256xf32> to vector<2x256xf32>
    %2 = arith.truncf %1 : vector<2x256xf32> to vector<2x256xbf16>
    %c0_2 = arith.constant 0 : index
    %c0_3 = arith.constant 0 : index
    %3 = vector.load %arg2[%c0_2, %c0_3] : memref<256x256xbf16, #tpu.memory_space<vmem>>, vector<256x256xbf16>
    %cst = arith.constant dense<0.000000e+00> : vector<2x256xf32>
    %4 = tpu.matmul %2, %3, %cst {dimension_numbers = #tpu.dot_dimension_numbers<[1], [0], [0], [1], [0, 0, 1, 1], [], []>} : vector<2x256xbf16>, vector<256x256xbf16>, vector<2x256xf32> -> vector<2x256xf32>
    %c0_4 = arith.constant 0 : index
    %c0_5 = arith.constant 0 : index
    %5 = vector.load %arg3[%c0_4, %c0_5] : memref<1x256xf32, #tpu.memory_space<vmem>>, vector<1x256xf32>
    %6 = vector.broadcast %5 : vector<1x256xf32> to vector<2x256xf32>
    %7 = arith.addf %4, %6 : vector<2x256xf32>
    %cst_6 = arith.constant 2.000000e+01 : f32
    %8 = vector.broadcast %cst_6 : f32 to vector<2x256xf32>
    %9 = arith.cmpf ogt, %7, %8 : vector<2x256xf32>
    %cst_7 = arith.constant 2.000000e+01 : f32
    %10 = vector.broadcast %cst_7 : f32 to vector<2x256xf32>
    %11 = arith.minimumf %7, %10 : vector<2x256xf32>
    %12 = math.exp %11 : vector<2x256xf32>
    %13 = math.log1p %12 : vector<2x256xf32>
    %14 = arith.select %9, %7, %13 : vector<2x256xi1>, vector<2x256xf32>
    %15 = math.tanh %14 : vector<2x256xf32>
    %16 = arith.mulf %7, %15 : vector<2x256xf32>
    %17 = arith.truncf %16 : vector<2x256xf32> to vector<2x256xbf16>
    %c0_8 = arith.constant 0 : index
    %c0_9 = arith.constant 0 : index
    %18 = vector.load %arg4[%c0_8, %c0_9] : memref<256x128xbf16, #tpu.memory_space<vmem>>, vector<256x128xbf16>
    %cst_10 = arith.constant dense<0.000000e+00> : vector<2x128xf32>
    %19 = tpu.matmul %17, %18, %cst_10 {dimension_numbers = #tpu.dot_dimension_numbers<[1], [0], [0], [1], [0, 0, 1, 1], [], []>} : vector<2x256xbf16>, vector<256x128xbf16>, vector<2x128xf32> -> vector<2x128xf32>
    %c0_11 = arith.constant 0 : index
    %c0_12 = arith.constant 0 : index
    %20 = vector.load %arg5[%c0_11, %c0_12] : memref<1x128xf32, #tpu.memory_space<vmem>>, vector<1x128xf32>
    %21 = vector.broadcast %20 : vector<1x128xf32> to vector<2x128xf32>
    %22 = arith.addf %19, %21 : vector<2x128xf32>
    %c0_13 = arith.constant 0 : index
    %c0_14 = arith.constant 0 : index
    %23 = vector.load %arg6[%c0_13, %c0_14] : memref<2x128xf32, #tpu.memory_space<vmem>>, vector<2x128xf32>
    tpu.vector_store %arg6[%c0_13, %c0_14], %22 {strides = array<i32>} : memref<2x128xf32, #tpu.memory_space<vmem>>, vector<2x128xf32>,
    return
  }
  func.func @transform_0(%arg0: i32) -> (i32, i32, i32) {
    %c0_i32 = arith.constant 0 : i32
    %c0_i32_0 = arith.constant 0 : i32
    %c0_i32_1 = arith.constant 0 : i32
    return %arg0, %c0_i32, %c0_i32_0 : i32, i32, i32
  }
  func.func @transform_1(%arg0: i32) -> (i32, i32) {
    %c0_i32 = arith.constant 0 : i32
    %c0_i32_0 = arith.constant 0 : i32
    %c0_i32_1 = arith.constant 0 : i32
    return %c0_i32, %c0_i32_0 : i32, i32
  }
  func.func @transform_2(%arg0: i32) -> (i32, i32) {
    %c0_i32 = arith.constant 0 : i32
    %c0_i32_0 = arith.constant 0 : i32
    %c0_i32_1 = arith.constant 0 : i32
    return %c0_i32, %c0_i32_0 : i32, i32
  }
  func.func @transform_3(%arg0: i32) -> (i32, i32) {
    %c0_i32 = arith.constant 0 : i32
    %c0_i32_0 = arith.constant 0 : i32
    %c0_i32_1 = arith.constant 0 : i32
    return %c0_i32, %c0_i32_0 : i32, i32
  }
  func.func @transform_4(%arg0: i32) -> (i32, i32) {
    %c0_i32 = arith.constant 0 : i32
    %c0_i32_0 = arith.constant 0 : i32
    %c0_i32_1 = arith.constant 0 : i32
    return %c0_i32, %c0_i32_0 : i32, i32
  }
  func.func @transform_5(%arg0: i32) -> (i32, i32) {
    %c0_i32 = arith.constant 0 : i32
    %c0_i32_0 = arith.constant 0 : i32
    return %arg0, %c0_i32 : i32, i32
  }
}

</mosaic_0001>

<llo_original>
// kernel: tpu_custom_call.1
$region0: #{tpu_custom_call.1}
  #allocation0 [shape = 'u32[]', space=smem, size = 0x4, offset = 0x4, fixed_abs, tag = 'smem constant byte address 0x4 - core index']
  #allocation1 [shape = 'u32[72,128]{1,0:T(1,128)}', space=vmem, size = 0x9000, scoped, tag = 'internal scratch']
  %s0 = inlined_call_operand.hbm [shape: f32[2,8,256], index: 0, kind: input, shape index: {}]
  %s1 = inlined_call_operand.hbm [shape: bf16[256,256], index: 1, kind: input, shape index: {}]
  %s2 = inlined_call_operand.hbm [shape: f32[1,256], index: 2, kind: input, shape index: {}]
  %s3 = inlined_call_operand.hbm [shape: bf16[256,128], index: 3, kind: input, shape index: {}]
  %s4 = inlined_call_operand.vmem [shape: f32[1,128], index: 4, kind: input, shape index: {}]
  %s5 = inlined_call_operand.hbm [shape: f32[2,128], index: 5, kind: output, shape index: {}]
  %s6 = sld [smem:[#allocation0]]
  $region46: #{tpu_custom_call.1} parent=0
    _
  %s8 = ssub.s32 1, %s6
  %s9 = scalar_select 0, %s8, %s6
  $region1: #{tpu_custom_call.1} parent=0
    #allocation2 [shape = 'u8[16384]{0}', space=vmem, size = 0x4000, scoped, tag = 'input window, operand 0, single buffered']
    #allocation3 [shape = 's32[1]{0}', space=sflag, size = 0x4, scoped, tag = 'scoped memory for tpu_custom_call.1']
    #allocation4 [shape = 's32[1]{0}', space=sflag, size = 0x4, scoped, tag = 'scoped memory for tpu_custom_call.1']
    #allocation5 [shape = 'u8[131072]{0}', space=vmem, size = 0x20000, scoped, tag = 'input window, operand 1, single buffered']
    #allocation6 [shape = 's32[1]{0}', space=sflag, size = 0x4, scoped, tag = 'scoped memory for tpu_custom_call.1']
    #allocation7 [shape = 'u8[1024]{0}', space=vmem, size = 0x400, scoped, tag = 'input window, operand 2, single buffered']
    #allocation8 [shape = 'u8[65536]{0}', space=vmem, size = 0x10000, scoped, tag = 'input window, operand 3, single buffered']
    #allocation9 [shape = 's32[1]{0}', space=sflag, size = 0x4, scoped, tag = 'scoped memory for tpu_custom_call.1']
    #allocation10 [shape = 'u8[1024]{0}', space=vmem, size = 0x400, scoped, tag = 'output window, operand 0, single buffered']
    %10 = vsyncpa [#allocation3], 0
    %11 = vsyncpa [#allocation6], 0
    %12 = vsyncpa [#allocation9], 0
    %13 = vsyncpa [#allocation4], 0
    // Predicated region
    $region2: #{tpu_custom_call.1} parent=1 // pred_check
      _
    $region3: #{tpu_custom_call.1} parent=1 // pred_check_branch
      %15 = sbr.rel (0) target = $region5
    $region4: #{tpu_custom_call.1} parent=1 // pred_region
      %17 = vsyncadd [#allocation3], 0
      %s18 = sshll.u32 %s0, 4
      %s19 = int_to_ptr.hbm [resolvable:$true] %s18
      %s20 = sshll.u32 [#allocation2], 4
      %s21 = int_to_ptr.vmem [resolvable:$true] %s20
      %26 = dma.hbm_to_vmem [thread:$0]  %s19, 512, %s21, [#allocation3], 256, 256, 16
    $region5: #{tpu_custom_call.1} parent=1 // pred_fallthru
      _
    // Predicated region
    $region6: #{tpu_custom_call.1} parent=1 // pred_check
      _
    $region7: #{tpu_custom_call.1} parent=1 // pred_check_branch
      %28 = sbr.rel (0) target = $region9
    $region8: #{tpu_custom_call.1} parent=1 // pred_region
      %30 = vsyncadd [#allocation6], 0
      %s31 = sshll.u32 %s1, 4
      %s32 = int_to_ptr.hbm [resolvable:$true] %s31
      %s33 = sshll.u32 [#allocation5], 4
      %s34 = int_to_ptr.vmem [resolvable:$true] %s33
      %39 = dma.hbm_to_vmem [thread:$0]  %s32, 4096, %s34, [#allocation6], 128, 128, 8
    $region9: #{tpu_custom_call.1} parent=1 // pred_fallthru
      _
    // Predicated region
    $region10: #{tpu_custom_call.1} parent=1 // pred_check
      _
    $region11: #{tpu_custom_call.1} parent=1 // pred_check_branch
      %41 = sbr.rel (0) target = $region13
    $region12: #{tpu_custom_call.1} parent=1 // pred_region
      %43 = vsyncadd [#allocation6], 0
      %s45 = sshll.u32 %s2, 4
      %s46 = int_to_ptr.hbm [resolvable:$true] %s45
      %s47 = sshll.u32 [#allocation7], 4
      %s48 = int_to_ptr.vmem [resolvable:$true] %s47
      %50 = dma.hbm_to_vmem [thread:$0]  %s46, 32, %s48, [#allocation6]
    $region13: #{tpu_custom_call.1} parent=1 // pred_fallthru
      _
    // Predicated region
    $region14: #{tpu_custom_call.1} parent=1 // pred_check
      _
    $region15: #{tpu_custom_call.1} parent=1 // pred_check_branch
      %52 = sbr.rel (0) target = $region17
    $region16: #{tpu_custom_call.1} parent=1 // pred_region
      %54 = vsyncadd [#allocation9], 0
      %s55 = sshll.u32 %s3, 4
      %s56 = int_to_ptr.hbm [resolvable:$true] %s55
      %s57 = sshll.u32 [#allocation8], 4
      %s58 = int_to_ptr.vmem [resolvable:$true] %s57
      %63 = dma.hbm_to_vmem [thread:$0]  %s56, 2048, %s58, [#allocation9], 64, 64, 4
    $region17: #{tpu_custom_call.1} parent=1 // pred_fallthru
      _
    // Predicated region
    $region18: #{tpu_custom_call.1} parent=1 // pred_check
      _
    $region19: #{tpu_custom_call.1} parent=1 // pred_check_branch
      %65 = sbr.rel (0) target = $region21
    $region20: #{tpu_custom_call.1} parent=1 // pred_region
      _
    $region21: #{tpu_custom_call.1} parent=1 // pred_fallthru
      _
    // Predicated region
    $region22: #{tpu_custom_call.1} parent=1 // pred_check
      _
    $region23: #{tpu_custom_call.1} parent=1 // pred_check_branch
      %67 = sbr.rel (0) target = $region25
    $region24: #{tpu_custom_call.1} parent=1 // pred_region
      %69 = dma.done [#allocation3], 512
    $region25: #{tpu_custom_call.1} parent=1 // pred_fallthru
      _
    // Predicated region
    $region26: #{tpu_custom_call.1} parent=1 // pred_check
      _
    $region27: #{tpu_custom_call.1} parent=1 // pred_check_branch
      %71 = sbr.rel (0) target = $region29
    $region28: #{tpu_custom_call.1} parent=1 // pred_region
      %73 = dma.done [#allocation6], 4096
    $region29: #{tpu_custom_call.1} parent=1 // pred_fallthru
      _
    // Predicated region
    $region30: #{tpu_custom_call.1} parent=1 // pred_check
      _
    $region31: #{tpu_custom_call.1} parent=1 // pred_check_branch
      %75 = sbr.rel (0) target = $region33
    $region32: #{tpu_custom_call.1} parent=1 // pred_region
      %77 = dma.done [#allocation6], 32
    $region33: #{tpu_custom_call.1} parent=1 // pred_fallthru
      _
    // Predicated region
    $region34: #{tpu_custom_call.1} parent=1 // pred_check
      _
    $region35: #{tpu_custom_call.1} parent=1 // pred_check_branch
      %79 = sbr.rel (0) target = $region37
    $region36: #{tpu_custom_call.1} parent=1 // pred_region
      %81 = dma.done [#allocation9], 2048
    $region37: #{tpu_custom_call.1} parent=1 // pred_fallthru
      _
    %v82 = vld [vmem:[#allocation2] ss:$8 sm:$0x3]
    %s83 = scalar_lea.vmem [#allocation2], 16
    %v84 = vld [vmem:[%s83] ss:$8 sm:$0x3]
    %v87 = vperm.slane %v82, 0
    %v88 = vperm.slane %v82, 1
    %v89 = vperm.slane %v84, 0
    %v90 = vperm.slane %v84, 1
    %v95 = vpack.c.bf16 %v87, %v87
    %v96 = vpack.c.bf16 %v88, %v88
    %v97 = vpack.c.bf16 %v89, %v89
    %v98 = vpack.c.bf16 %v90, %v90
    %v99 = vld [vmem:[#allocation5] sm:$0xff]
    %v100 = vld [vmem:[#allocation5 + $0x8] sm:$0xff]
    %v101 = vld [vmem:[#allocation5 + $0x10] sm:$0xff]
    %v102 = vld [vmem:[#allocation5 + $0x18] sm:$0xff]
    %v103 = vld [vmem:[#allocation5 + $0x20] sm:$0xff]
    %v104 = vld [vmem:[#allocation5 + $0x28] sm:$0xff]
    %v105 = vld [vmem:[#allocation5 + $0x30] sm:$0xff]
    %v106 = vld [vmem:[#allocation5 + $0x38] sm:$0xff]
    %v107 = vld [vmem:[#allocation5 + $0x40] sm:$0xff]
    %v108 = vld [vmem:[#allocation5 + $0x48] sm:$0xff]
    %v109 = vld [vmem:[#allocation5 + $0x50] sm:$0xff]
    %v110 = vld [vmem:[#allocation5 + $0x58] sm:$0xff]
    %v111 = vld [vmem:[#allocation5 + $0x60] sm:$0xff]
    %v112 = vld [vmem:[#allocation5 + $0x68] sm:$0xff]
    %v113 = vld [vmem:[#allocation5 + $0x70] sm:$0xff]
    %v114 = vld [vmem:[#allocation5 + $0x78] sm:$0xff]
    %v115 = vld [vmem:[#allocation5 + $0x80] sm:$0xff]
    %v116 = vld [vmem:[#allocation5 + $0x88] sm:$0xff]
    %v117 = vld [vmem:[#allocation5 + $0x90] sm:$0xff]
    %v118 = vld [vmem:[#allocation5 + $0x98] sm:$0xff]
    %v119 = vld [vmem:[#allocation5 + $0xa0] sm:$0xff]
    %v120 = vld [vmem:[#allocation5 + $0xa8] sm:$0xff]
    %v121 = vld [vmem:[#allocation5 + $0xb0] sm:$0xff]
    %v122 = vld [vmem:[#allocation5 + $0xb8] sm:$0xff]
    %v123 = vld [vmem:[#allocation5 + $0xc0] sm:$0xff]
    %v124 = vld [vmem:[#allocation5 + $0xc8] sm:$0xff]
    %v125 = vld [vmem:[#allocation5 + $0xd0] sm:$0xff]
    %v126 = vld [vmem:[#allocation5 + $0xd8] sm:$0xff]
    %v127 = vld [vmem:[#allocation5 + $0xe0] sm:$0xff]
    %v128 = vld [vmem:[#allocation5 + $0xe8] sm:$0xff]
    %v129 = vld [vmem:[#allocation5 + $0xf0] sm:$0xff]
    %v130 = vld [vmem:[#allocation5 + $0xf8] sm:$0xff]
    %v131 = vld [vmem:[#allocation7] sm:$0x3]
    %v133 = vperm.slane %v131, 0
    %v134 = vperm.slane %v131, 1
    %v141 = vunpack.c.l.b16 %v95
    %v142 = vunpack.c.l.b16 %v96
    %v143 = vunpack.c.l.b16 %v97
    %v144 = vunpack.c.l.b16 %v98
    %v145 = vrot.slane %v143, 7
    %vm146 = vcmask 1041409
    %v147 = vsel %vm146, %v145, %v141
    %v148 = vrot.slane %v144, 7
    %v149 = vsel %vm146, %v148, %v142
    %v150 = vpack.c.b16 %v147, %v147
    %v151 = vpack.c.b16 %v149, %v149
    %v186 = vunpack.c.l.b16 %v99
    %v187 = vunpack.c.h.b16 %v99
    %v188 = vunpack.c.l.b16 %v100
    %v189 = vunpack.c.h.b16 %v100
    %v190 = vunpack.c.l.b16 %v101
    %v191 = vunpack.c.h.b16 %v101
    %v192 = vunpack.c.l.b16 %v102
    %v193 = vunpack.c.h.b16 %v102
    %v194 = vunpack.c.l.b16 %v103
    %v195 = vunpack.c.h.b16 %v103
    %v196 = vunpack.c.l.b16 %v104
    %v197 = vunpack.c.h.b16 %v104
    %v198 = vunpack.c.l.b16 %v105
    %v199 = vunpack.c.h.b16 %v105
    %v200 = vunpack.c.l.b16 %v106
    %v201 = vunpack.c.h.b16 %v106
    %v202 = vunpack.c.l.b16 %v107
    %v203 = vunpack.c.h.b16 %v107
    %v204 = vunpack.c.l.b16 %v108
    %v205 = vunpack.c.h.b16 %v108
    %v206 = vunpack.c.l.b16 %v109
    %v207 = vunpack.c.h.b16 %v109
    %v208 = vunpack.c.l.b16 %v110
    %v209 = vunpack.c.h.b16 %v110
    %v210 = vunpack.c.l.b16 %v111
    %v211 = vunpack.c.h.b16 %v111
    %v212 = vunpack.c.l.b16 %v112
    %v213 = vunpack.c.h.b16 %v112
    %v214 = vunpack.c.l.b16 %v113
    %v215 = vunpack.c.h.b16 %v113
    %v216 = vunpack.c.l.b16 %v114
    %v217 = vunpack.c.h.b16 %v114
    %v218 = vunpack.c.l.b16 %v115
    %v219 = vunpack.c.h.b16 %v115
    %v220 = vunpack.c.l.b16 %v116
    %v221 = vunpack.c.h.b16 %v116
    %v222 = vunpack.c.l.b16 %v117
    %v223 = vunpack.c.h.b16 %v117
    %v224 = vunpack.c.l.b16 %v118
    %v225 = vunpack.c.h.b16 %v118
    %v226 = vunpack.c.l.b16 %v119
    %v227 = vunpack.c.h.b16 %v119
    %v228 = vunpack.c.l.b16 %v120
    %v229 = vunpack.c.h.b16 %v120
    %v230 = vunpack.c.l.b16 %v121
    %v231 = vunpack.c.h.b16 %v121
    %v232 = vunpack.c.l.b16 %v122
    %v233 = vunpack.c.h.b16 %v122
    %v234 = vunpack.c.l.b16 %v123
    %v235 = vunpack.c.h.b16 %v123
    %v236 = vunpack.c.l.b16 %v124
    %v237 = vunpack.c.h.b16 %v124
    %v238 = vunpack.c.l.b16 %v125
    %v239 = vunpack.c.h.b16 %v125
    %v240 = vunpack.c.l.b16 %v126
    %v241 = vunpack.c.h.b16 %v126
    %v242 = vunpack.c.l.b16 %v127
    %v243 = vunpack.c.h.b16 %v127
    %v244 = vunpack.c.l.b16 %v128
    %v245 = vunpack.c.h.b16 %v128
    %v246 = vunpack.c.l.b16 %v129
    %v247 = vunpack.c.h.b16 %v129
    %v248 = vunpack.c.l.b16 %v130
    %v249 = vunpack.c.h.b16 %v130
    %v250 = vpack.c.b16 %v188, %v186
    %v251 = vpack.c.b16 %v189, %v187
    %v252 = vpack.c.b16 %v192, %v190
    %v253 = vpack.c.b16 %v193, %v191
    %v254 = vpack.c.b16 %v196, %v194
    %v255 = vpack.c.b16 %v197, %v195
    %v256 = vpack.c.b16 %v200, %v198
    %v257 = vpack.c.b16 %v201, %v199
    %v258 = vpack.c.b16 %v204, %v202
    %v259 = vpack.c.b16 %v205, %v203
    %v260 = vpack.c.b16 %v208, %v206
    %v261 = vpack.c.b16 %v209, %v207
    %v262 = vpack.c.b16 %v212, %v210
    %v263 = vpack.c.b16 %v213, %v211
    %v264 = vpack.c.b16 %v216, %v214
    %v265 = vpack.c.b16 %v217, %v215
    %v266 = vpack.c.b16 %v220, %v218
    %v267 = vpack.c.b16 %v221, %v219
    %v268 = vpack.c.b16 %v224, %v222
    %v269 = vpack.c.b16 %v225, %v223
    %v270 = vpack.c.b16 %v228, %v226
    %v271 = vpack.c.b16 %v229, %v227
    %v272 = vpack.c.b16 %v232, %v230
    %v273 = vpack.c.b16 %v233, %v231
    %v274 = vpack.c.b16 %v236, %v234
    %v275 = vpack.c.b16 %v237, %v235
    %v276 = vpack.c.b16 %v240, %v238
    %v277 = vpack.c.b16 %v241, %v239
    %v278 = vpack.c.b16 %v244, %v242
    %v279 = vpack.c.b16 %v245, %v243
    %v280 = vpack.c.b16 %v248, %v246
    %v281 = vpack.c.b16 %v249, %v247
    %314 = vmatpush.bf16.msra.mxu0 %v264
    %315 = vmatpush.bf16.msra.mxu0 %v262
    %316 = vmatpush.bf16.msra.mxu0 %v260
    %317 = vmatpush.bf16.msra.mxu0 %v258
    %318 = vmatpush.bf16.msra.mxu0 %v256
    %319 = vmatpush.bf16.msra.mxu0 %v254
    %320 = vmatpush.bf16.msra.mxu0 %v252
    %321 = vmatpush.bf16.msra.mxu0 %v250
    %322 = vmatmul.bf16.gmra.mxu0 %v150
    %v323 = vpop.f32.mrf.mxu0
    %v324 = vadd.f32 %v133, %v323
    %v325 = vpop.f32.mrf.mxu0
    %326 = vdwg.mxu0
    %327 = vmatpush.bf16.msra.mxu0 %v280
    %328 = vmatpush.bf16.msra.mxu0 %v278
    %329 = vmatpush.bf16.msra.mxu0 %v276
    %330 = vmatpush.bf16.msra.mxu0 %v274
    %331 = vmatpush.bf16.msra.mxu0 %v272
    %332 = vmatpush.bf16.msra.mxu0 %v270
    %333 = vmatpush.bf16.msra.mxu0 %v268
    %334 = vmatpush.bf16.msra.mxu0 %v266
    %335 = vmatmul.bf16.gmra.mxu0 %v151
    %v336 = vpop.f32.mrf.mxu0
    %v337 = vadd.f32 %v324, %v336
    %v338 = vpop.f32.mrf.mxu0
    %339 = vdwg.mxu0
    %340 = vmatpush.bf16.msra.mxu0 %v265
    %341 = vmatpush.bf16.msra.mxu0 %v263
    %342 = vmatpush.bf16.msra.mxu0 %v261
    %343 = vmatpush.bf16.msra.mxu0 %v259
    %344 = vmatpush.bf16.msra.mxu0 %v257
    %345 = vmatpush.bf16.msra.mxu0 %v255
    %346 = vmatpush.bf16.msra.mxu0 %v253
    %347 = vmatpush.bf16.msra.mxu0 %v251
    %348 = vmatmul.bf16.gmra.mxu0 %v150
    %v349 = vpop.f32.mrf.mxu0
    %v350 = vadd.f32 %v134, %v349
    %v351 = vpop.f32.mrf.mxu0
    %352 = vdwg.mxu0
    %353 = vmatpush.bf16.msra.mxu0 %v281
    %354 = vmatpush.bf16.msra.mxu0 %v279
    %355 = vmatpush.bf16.msra.mxu0 %v277
    %356 = vmatpush.bf16.msra.mxu0 %v275
    %357 = vmatpush.bf16.msra.mxu0 %v273
    %358 = vmatpush.bf16.msra.mxu0 %v271
    %359 = vmatpush.bf16.msra.mxu0 %v269
    %360 = vmatpush.bf16.msra.mxu0 %v267
    %361 = vmatmul.bf16.gmra.mxu0 %v151
    %v362 = vpop.f32.mrf.mxu0
    %v363 = vadd.f32 %v350, %v362
    %v364 = vpop.f32.mrf.mxu0
    %365 = vdwg.mxu0
    %vm366 = vcmp.gt.f32.partialorder %v337, 20.0
    %vm367 = vcmp.gt.f32.partialorder %v363, 20.0
    %v368 = vmin.f32 %v337, 20.0
    %v369 = vmin.f32 %v363, 20.0
    %v370 = vmul.f32 %v368, 1.442695
    %v371 = vpow.pop %v370
    %v372 = vmul.f32 %v369, 1.442695
    %v373 = vpow.pop %v372
    %v374 = vadd.f32 %v371, 1.0
    %v375 = vlog2.pop %v374
    %v376 = vmul.f32 %v375, 0.6931472
    %v377 = vmul.f32 -0.5, %v371
    %v378 = vadd.f32 %v377, 1.0
    %v379 = vmul.f32 %v378, %v371
    %v380 = vand.u32 2147483647, %v371
    %vm381 = vcmp.lt.f32.partialorder %v380, 0.0004427343
    %v382 = vsel %vm381, %v379, %v376
    %v383 = vadd.f32 %v373, 1.0
    %v384 = vlog2.pop %v383
    %v385 = vmul.f32 %v384, 0.6931472
    %v386 = vmul.f32 -0.5, %v373
    %v387 = vadd.f32 %v386, 1.0
    %v388 = vmul.f32 %v387, %v373
    %v389 = vand.u32 2147483647, %v373
    %vm390 = vcmp.lt.f32.partialorder %v389, 0.0004427343
    %v391 = vsel %vm390, %v388, %v385
    %v392 = vsel %vm366, %v337, %v382
    %v393 = vsel %vm367, %v363, %v391
    %v394 = vtanh.pop %v392
    %v395 = vtanh.pop %v393
    %v396 = vmul.f32 %v337, %v394
    %v397 = vmul.f32 %v363, %v395
    %v398 = vpack.c.bf16 %v396, %v396
    %v399 = vpack.c.bf16 %v397, %v397
    %v400 = vld [vmem:[#allocation8] sm:$0xf]
    %v401 = vld [vmem:[#allocation8 + $0x4] sm:$0xf]
    %v402 = vld [vmem:[#allocation8 + $0x8] sm:$0xf]
    %v403 = vld [vmem:[#allocation8 + $0xc] sm:$0xf]
    %v404 = vld [vmem:[#allocation8 + $0x10] sm:$0xf]
    %v405 = vld [vmem:[#allocation8 + $0x14] sm:$0xf]
    %v406 = vld [vmem:[#allocation8 + $0x18] sm:$0xf]
    %v407 = vld [vmem:[#allocation8 + $0x1c] sm:$0xf]
    %v408 = vld [vmem:[#allocation8 + $0x20] sm:$0xf]
    %v409 = vld [vmem:[#allocation8 + $0x24] sm:$0xf]
    %v410 = vld [vmem:[#allocation8 + $0x28] sm:$0xf]
    %v411 = vld [vmem:[#allocation8 + $0x2c] sm:$0xf]
    %v412 = vld [vmem:[#allocation8 + $0x30] sm:$0xf]
    %v413 = vld [vmem:[#allocation8 + $0x34] sm:$0xf]
    %v414 = vld [vmem:[#allocation8 + $0x38] sm:$0xf]
    %v415 = vld [vmem:[#allocation8 + $0x3c] sm:$0xf]
    %v416 = vld [vmem:[#allocation8 + $0x40] sm:$0xf]
    %v417 = vld [vmem:[#allocation8 + $0x44] sm:$0xf]
    %v418 = vld [vmem:[#allocation8 + $0x48] sm:$0xf]
    %v419 = vld [vmem:[#allocation8 + $0x4c] sm:$0xf]
    %v420 = vld [vmem:[#allocation8 + $0x50] sm:$0xf]
    %v421 = vld [vmem:[#allocation8 + $0x54] sm:$0xf]
    %v422 = vld [vmem:[#allocation8 + $0x58] sm:$0xf]
    %v423 = vld [vmem:[#allocation8 + $0x5c] sm:$0xf]
    %v424 = vld [vmem:[#allocation8 + $0x60] sm:$0xf]
    %v425 = vld [vmem:[#allocation8 + $0x64] sm:$0xf]
    %v426 = vld [vmem:[#allocation8 + $0x68] sm:$0xf]
    %v427 = vld [vmem:[#allocation8 + $0x6c] sm:$0xf]
    %v428 = vld [vmem:[#allocation8 + $0x70] sm:$0xf]
    %v429 = vld [vmem:[#allocation8 + $0x74] sm:$0xf]
    %v430 = vld [vmem:[#allocation8 + $0x78] sm:$0xf]
    %v431 = vld [vmem:[#allocation8 + $0x7c] sm:$0xf]
    %v432 = vld [vmem:[%s4] sm:$0x1]
    %v434 = vperm.slane %v432, 0
    %v468 = vunpack.c.l.b16 %v400
    %v469 = vunpack.c.l.b16 %v401
    %v470 = vunpack.c.l.b16 %v402
    %v471 = vunpack.c.l.b16 %v403
    %v472 = vunpack.c.l.b16 %v404
    %v473 = vunpack.c.l.b16 %v405
    %v474 = vunpack.c.l.b16 %v406
    %v475 = vunpack.c.l.b16 %v407
    %v476 = vunpack.c.l.b16 %v408
    %v477 = vunpack.c.l.b16 %v409
    %v478 = vunpack.c.l.b16 %v410
    %v479 = vunpack.c.l.b16 %v411
    %v480 = vunpack.c.l.b16 %v412
    %v481 = vunpack.c.l.b16 %v413
    %v482 = vunpack.c.l.b16 %v414
    %v483 = vunpack.c.l.b16 %v415
    %v484 = vunpack.c.l.b16 %v416
    %v485 = vunpack.c.l.b16 %v417
    %v486 = vunpack.c.l.b16 %v418
    %v487 = vunpack.c.l.b16 %v419
    %v488 = vunpack.c.l.b16 %v420
    %v489 = vunpack.c.l.b16 %v421
    %v490 = vunpack.c.l.b16 %v422
    %v491 = vunpack.c.l.b16 %v423
    %v492 = vunpack.c.l.b16 %v424
    %v493 = vunpack.c.l.b16 %v425
    %v494 = vunpack.c.l.b16 %v426
    %v495 = vunpack.c.l.b16 %v427
    %v496 = vunpack.c.l.b16 %v428
    %v497 = vunpack.c.l.b16 %v429
    %v498 = vunpack.c.l.b16 %v430
    %v499 = vunpack.c.l.b16 %v431
    %v500 = vpack.c.b16 %v469, %v468
    %v501 = vpack.c.b16 %v471, %v470
    %v502 = vpack.c.b16 %v473, %v472
    %v503 = vpack.c.b16 %v475, %v474
    %v504 = vpack.c.b16 %v477, %v476
    %v505 = vpack.c.b16 %v479, %v478
    %v506 = vpack.c.b16 %v481, %v480
    %v507 = vpack.c.b16 %v483, %v482
    %v508 = vpack.c.b16 %v485, %v484
    %v509 = vpack.c.b16 %v487, %v486
    %v510 = vpack.c.b16 %v489, %v488
    %v511 = vpack.c.b16 %v491, %v490
    %v512 = vpack.c.b16 %v493, %v492
    %v513 = vpack.c.b16 %v495, %v494
    %v514 = vpack.c.b16 %v497, %v496
    %v515 = vpack.c.b16 %v499, %v498
    %532 = vmatpush.bf16.msra.mxu0 %v507
    %533 = vmatpush.bf16.msra.mxu0 %v506
    %534 = vmatpush.bf16.msra.mxu0 %v505
    %535 = vmatpush.bf16.msra.mxu0 %v504
    %536 = vmatpush.bf16.msra.mxu0 %v503
    %537 = vmatpush.bf16.msra.mxu0 %v502
    %538 = vmatpush.bf16.msra.mxu0 %v501
    %539 = vmatpush.bf16.msra.mxu0 %v500
    %540 = vmatmul.bf16.gmra.mxu0 %v398
    %v541 = vpop.f32.mrf.mxu0
    %v542 = vadd.f32 %v434, %v541
    %v543 = vpop.f32.mrf.mxu0
    %544 = vdwg.mxu0
    %545 = vmatpush.bf16.msra.mxu0 %v515
    %546 = vmatpush.bf16.msra.mxu0 %v514
    %547 = vmatpush.bf16.msra.mxu0 %v513
    %548 = vmatpush.bf16.msra.mxu0 %v512
    %549 = vmatpush.bf16.msra.mxu0 %v511
    %550 = vmatpush.bf16.msra.mxu0 %v510
    %551 = vmatpush.bf16.msra.mxu0 %v509
    %552 = vmatpush.bf16.msra.mxu0 %v508
    %553 = vmatmul.bf16.gmra.mxu0 %v399
    %v554 = vpop.f32.mrf.mxu0
    %v555 = vadd.f32 %v542, %v554
    %v556 = vpop.f32.mrf.mxu0
    %557 = vdwg.mxu0
    %558 = vst [vmem:[#allocation10] sm:$0x3] %v555
    // Predicated region
    $region38: #{tpu_custom_call.1} parent=1 // pred_check
      _
    $region39: #{tpu_custom_call.1} parent=1 // pred_check_branch
      %560 = sbr.rel (0) target = $region41
    $region40: #{tpu_custom_call.1} parent=1 // pred_region
      %562 = vsyncadd [#allocation4], 0
      %s564 = sshll.u32 [#allocation10], 4
      %s565 = int_to_ptr.vmem [resolvable:$true] %s564
      %s566 = sshll.u32 %s5, 4
      %s567 = int_to_ptr.hbm [resolvable:$true] %s566
      %569 = dma.vmem_to_hbm [thread:$0]  %s565, 32, %s567, [#allocation4]
    $region41: #{tpu_custom_call.1} parent=1 // pred_fallthru
      _
    // Predicated region
    $region42: #{tpu_custom_call.1} parent=1 // pred_check
      _
    $region43: #{tpu_custom_call.1} parent=1 // pred_check_branch
      %571 = sbr.rel (0) target = $region45
    $region44: #{tpu_custom_call.1} parent=1 // pred_region
      %573 = dma.done [#allocation4], 32
    $region45: #{tpu_custom_call.1} parent=1 // pred_fallthru
      _
    %574 = vsyncpa [#allocation3], 1
    %575 = vsyncpa [#allocation6], 1
    %576 = vsyncpa [#allocation9], 1
    %577 = vsyncpa [#allocation4], 1

</llo_original>
